<compile_context>
chip_gen: v5e
topology: v5e:2x2
jax: 0.10.0
libtpu: 0.0.40
codegen_flags: <defaults>
</compile_context>

<pallas_src>
import math

import jax
import jax.numpy as jnp
import numpy as np
from jax.experimental import pallas as pl
from jax.experimental.pallas import tpu as pltpu


# ----------------------------- Pallas kernel ------------------------------------------


def _tcn_gcn_kernel(
    x_ref,    # (1, Cin*T, V)            input, V-minor layout, bf16
    a_ref,    # (num_A, V, V)            adjacency matrices, bf16
    hg_ref,   # (num_A, Cout*T, Cin*T)   kron(Wg_i, I_T), BN scale folded, bf16
    gt_ref,   # (Cout*T, Cout*T)         temporal band matrix (conv + padding), bf16
    hd_ref,   # (Cout*T, Cin*T)          kron(Wd, I_T), BN scale folded, bf16
    sh_ref,   # (Cout*T, 3)              folded BN shifts [gcn, tcn, down], f32
    o_ref,    # (1, Cout*T, V)           output, V-minor layout, f32
):
    f32, bf16 = jnp.float32, jnp.bfloat16
    num_A = a_ref.shape[0]

    x = x_ref[0]                                    # (Cin*T, V)   bf16
    sh = sh_ref[...]                                # (Cout*T, 3)  f32

    # ---------------- Unit_GCN: graph mix + fused 1x1 channel mix ---------------------
    acc = None
    for i in range(num_A):
        xa = jnp.dot(x, a_ref[i], preferred_element_type=f32).astype(bf16)   # (Cin*T, V)
        p = jnp.dot(hg_ref[i], xa, preferred_element_type=f32)               # (Cout*T, V)
        acc = p if acc is None else acc + p
    y = jnp.maximum(acc + sh[:, 0:1], 0.0).astype(bf16)                      # BN + ReLU

    # ---------------- Unit2D (tcn1): (K,1) temporal conv as one banded matmul ---------
    z = jnp.dot(gt_ref[...], y, preferred_element_type=f32)                  # (Cout*T, V)
    z = jnp.maximum(z + sh[:, 1:2], 0.0)                                     # BN + ReLU

    # ---------------- down1 residual branch: 1x1 conv + BN + ReLU ---------------------
    d = jnp.dot(hd_ref[...], x, preferred_element_type=f32)                  # (Cout*T, V)
    d = jnp.maximum(d + sh[:, 2:3], 0.0)

    o_ref[0] = (z + d).astype(o_ref.dtype)


# ----------------------------- wrapper (glue) -----------------------------------------


def _fold_bn(bn, eps=1e-5):
    scale = bn["gamma"] / jnp.sqrt(bn["var"] + eps)
    shift = bn["beta"] - bn["mean"] * scale
    return scale, shift


def tcn_gcn_unit_forward(x, params):
    """x: (N, Cin, T, V) float32 (NCHW, H=T, W=V). Returns (N, Cout, T, V) float32."""
    N, Cin, T, V = x.shape
    A = params["A"]
    num_A = A.shape[0]
    Cout = params["gcn_w"].shape[1]
    K = params["tcn_w"].shape[-1]
    pad = (K - 1) // 2
    f32, bf16 = jnp.float32, jnp.bfloat16

    # Activation layout: NCHW -> (Cin*T, V) is a pure reshape (no transpose), bf16.
    x_vm = x.reshape(N, Cin * T, V).astype(bf16)

    # Fold BN (inference) and conv biases:  BN(acc + b) = s*acc + (s*b + h).
    sg, shift_g = _fold_bn(params["gcn_bn"])
    shift_g = sg * params["gcn_b"].sum(axis=0) + shift_g
    st, shift_t = _fold_bn(params["tcn_bn"])
    shift_t = st * params["tcn_b"] + shift_t
    sd, shift_d = _fold_bn(params["down_bn"])
    shift_d = sd * params["down_b"] + shift_d

    eye_t = jnp.eye(T, dtype=f32)

    # Per-branch 1x1 channel mix as kron(Wg_i, I_T), BN scale folded into the rows.
    hg = jnp.einsum("ioc,tu->iotcu", params["gcn_w"] * sg[None, :, None], eye_t)
    hg = hg.reshape(num_A, Cout * T, Cin * T).astype(bf16)

    # Temporal (K,1) conv with symmetric zero padding as one block-banded matrix:
    # gt[(o,t),(c,t2)] = st[o] * Wt[o,c, t2 - t + pad]  (zero outside the band).
    shift_mats = jnp.stack([jnp.eye(T, T, k - pad, dtype=f32) for k in range(K)])  # (K,T,T)
    gt = jnp.einsum("ock,kts->otcs", params["tcn_w"] * st[:, None, None], shift_mats)
    gt = gt.reshape(Cout * T, Cout * T).astype(bf16)

    # Residual 1x1 conv as kron(Wd, I_T), BN scale folded in.
    hd = jnp.einsum("oc,tu->otcu", params["down_w"] * sd[:, None], eye_t)
    hd = hd.reshape(Cout * T, Cin * T).astype(bf16)

    # Folded shifts, replicated over the T frames of each channel (row index = o*T + t).
    sh = jnp.stack(
        [jnp.repeat(shift_g, T), jnp.repeat(shift_t, T), jnp.repeat(shift_d, T)],
        axis=1,
    ).astype(f32)                                                            # (Cout*T, 3)

    a_k = A.astype(bf16)                                                     # (num_A, V, V)

    out = pl.pallas_call(
        _tcn_gcn_kernel,
        out_shape=jax.ShapeDtypeStruct((N, Cout * T, V), f32),
        grid=(N,),
        in_specs=[
            pl.BlockSpec((1, Cin * T, V), lambda n: (n, 0, 0)),              # x (per sample)
            pl.BlockSpec((num_A, V, V), lambda n: (0, 0, 0)),                # A
            pl.BlockSpec((num_A, Cout * T, Cin * T), lambda n: (0, 0, 0)),   # GCN kron weights
            pl.BlockSpec((Cout * T, Cout * T), lambda n: (0, 0)),            # temporal band
            pl.BlockSpec((Cout * T, Cin * T), lambda n: (0, 0)),             # down kron weights
            pl.BlockSpec((Cout * T, 3), lambda n: (0, 0)),                   # folded BN shifts
        ],
        out_specs=pl.BlockSpec((1, Cout * T, V), lambda n: (n, 0, 0)),
        compiler_params=pltpu.CompilerParams(dimension_semantics=("parallel",)),
    )(x_vm, a_k, hg, gt, hd, sh)

    # (N, Cout*T, V) -> (N, Cout, T, V) is a pure reshape.
    return out.reshape(N, Cout, T, V)


# ----------------------------- deterministic params & reference -----------------------


def init_params(key, Cin, Cout, V, num_A=3, K=9):
    ks = jax.random.split(key, 10)

    def conv_w(k, shape, n):                      # conv_init: N(0, sqrt(2/n))
        return jax.random.normal(k, shape, jnp.float32) * math.sqrt(2.0 / n)

    def bn(k, C):
        k1, k2, k3, k4 = jax.random.split(k, 4)
        return dict(gamma=1.0 + 0.1 * jax.random.normal(k1, (C,), jnp.float32),
                    beta=0.1 * jax.random.normal(k2, (C,), jnp.float32),
                    mean=0.1 * jax.random.normal(k3, (C,), jnp.float32),
                    var=1.0 + 0.5 * jax.random.uniform(k4, (C,), jnp.float32))

    return dict(
        A=jax.random.uniform(ks[0], (num_A, V, V), jnp.float32) * (2.0 / V),
        gcn_w=conv_w(ks[1], (num_A, Cout, Cin), Cout),          # Conv2d(Cin,Cout,(1,1)) x num_A
        gcn_b=0.1 * jax.random.normal(ks[2], (num_A, Cout), jnp.float32),
        gcn_bn=bn(ks[3], Cout),
        tcn_w=conv_w(ks[4], (Cout, Cout, K), Cout * K),         # Conv2d(Cout,Cout,(K,1))
        tcn_b=0.1 * jax.random.normal(ks[5], (Cout,), jnp.float32),
        tcn_bn=bn(ks[6], Cout),
        down_w=conv_w(ks[7], (Cout, Cin), Cout),                # Conv2d(Cin,Cout,(1,1))
        down_b=0.1 * jax.random.normal(ks[8], (Cout,), jnp.float32),
        down_bn=bn(ks[9], Cout),
    )


def reference_forward(x, params):
    """Pure-JAX f32 reference mirroring the PyTorch forward (eval mode)."""
    N, Cin, T, V = x.shape
    A = params["A"]
    num_A = A.shape[0]
    Cout = params["gcn_w"].shape[1]
    K = params["tcn_w"].shape[-1]
    pad = (K - 1) // 2

    def bn_relu(t, bnp):
        s, h = _fold_bn(bnp)
        return jnp.maximum(t * s[None, :, None, None] + h[None, :, None, None], 0.0)

    y = jnp.zeros((N, Cout, T, V), jnp.float32)
    for i in range(num_A):
        xa = jnp.einsum("nctv,vw->nctw", x, A[i])
        y = y + jnp.einsum("oc,nctw->notw", params["gcn_w"][i], xa) \
              + params["gcn_b"][i][None, :, None, None]
    y = bn_relu(y, params["gcn_bn"])

    ypad = jnp.pad(y, ((0, 0), (0, 0), (pad, pad), (0, 0)))
    z = jnp.zeros((N, Cout, T, V), jnp.float32) + params["tcn_b"][None, :, None, None]
    for k in range(K):
        z = z + jnp.einsum("oc,nctw->notw", params["tcn_w"][:, :, k], ypad[:, :, k:k + T, :])
    z = bn_relu(z, params["tcn_bn"])

    d = jnp.einsum("oc,nctw->notw", params["down_w"], x) + params["down_b"][None, :, None, None]
    d = bn_relu(d, params["down_bn"])
    return z + d


# ----------------------------- main ----------------------------------------------------

if __name__ == "__main__":
    key = jax.random.PRNGKey(0)
    kx, kp = jax.random.split(key)

    N, Cin, Cout, T, V = 2, 4, 8, 16, 16
    num_A, K = 3, 9

    x = jax.random.normal(kx, (N, Cin, T, V), jnp.float32)
    params = init_params(kp, Cin, Cout, V, num_A=num_A, K=K)

    out = jax.block_until_ready(tcn_gcn_unit_forward(x, params))
    ref = jax.block_until_ready(reference_forward(x, params))

    np.testing.assert_allclose(np.asarray(out), np.asarray(ref), rtol=2e-2, atol=2e-2)
    print("KERNEL_OK")
</pallas_src>

<mosaic_0001>
module attributes {stable_mosaic.version = 11 : i64} {
  func.func @_tcn_gcn_kernel(%arg0: i32, %arg1: memref<1x64x16xbf16, #tpu.memory_space<vmem>>, %arg2: memref<3x16x16xbf16, #tpu.memory_space<vmem>>, %arg3: memref<3x128x64xbf16, #tpu.memory_space<vmem>>, %arg4: memref<128x128xbf16, #tpu.memory_space<vmem>>, %arg5: memref<128x64xbf16, #tpu.memory_space<vmem>>, %arg6: memref<128x3xf32, #tpu.memory_space<vmem>>, %arg7: memref<1x128x16xf32, #tpu.memory_space<vmem>>) attributes {dimension_semantics = [#tpu.dimension_semantics<parallel>], iteration_bounds = array<i64: 2>, scalar_prefetch = 0 : i64, scratch_operands = 0 : i64, tpu.core_type = #tpu.core_type<tc>, window_params = [{transform_indices = @transform_0, window_bounds = array<i64: 1, 64, 16>}, {pipeline_mode = #tpu.pipeline_mode<synchronous>, transform_indices = @transform_1, window_bounds = array<i64: 3, 16, 16>}, {pipeline_mode = #tpu.pipeline_mode<synchronous>, transform_indices = @transform_2, window_bounds = array<i64: 3, 128, 64>}, {pipeline_mode = #tpu.pipeline_mode<synchronous>, transform_indices = @transform_3, window_bounds = array<i64: 128, 128>}, {pipeline_mode = #tpu.pipeline_mode<synchronous>, transform_indices = @transform_4, window_bounds = array<i64: 128, 64>}, {pipeline_mode = #tpu.pipeline_mode<synchronous>, transform_indices = @transform_5, window_bounds = array<i64: 128, 3>}, {transform_indices = @transform_6, window_bounds = array<i64: 1, 128, 16>}]} {
    %c0 = arith.constant 0 : index
    %c0_0 = arith.constant 0 : index
    %c0_1 = arith.constant 0 : index
    %0 = vector.load %arg1[%c0, %c0_0, %c0_1] : memref<1x64x16xbf16, #tpu.memory_space<vmem>>, vector<1x64x16xbf16>
    %1 = vector.shape_cast %0 : vector<1x64x16xbf16> to vector<64x16xbf16>
    %c0_2 = arith.constant 0 : index
    %c0_3 = arith.constant 0 : index
    %2 = vector.load %arg6[%c0_2, %c0_3] : memref<128x3xf32, #tpu.memory_space<vmem>>, vector<128x3xf32>
    %c0_4 = arith.constant 0 : index
    %c0_5 = arith.constant 0 : index
    %c0_6 = arith.constant 0 : index
    %3 = vector.load %arg2[%c0_4, %c0_5, %c0_6] : memref<3x16x16xbf16, #tpu.memory_space<vmem>>, vector<1x16x16xbf16>
    %4 = vector.shape_cast %3 : vector<1x16x16xbf16> to vector<16x16xbf16>
    %cst = arith.constant dense<0.000000e+00> : vector<64x16xf32>
    %5 = tpu.matmul %1, %4, %cst {dimension_numbers = #tpu.dot_dimension_numbers<[1], [0], [0], [1], [0, 0, 1, 1], [], []>} : vector<64x16xbf16>, vector<16x16xbf16>, vector<64x16xf32> -> vector<64x16xf32>
    %6 = arith.truncf %5 : vector<64x16xf32> to vector<64x16xbf16>
    %c0_7 = arith.constant 0 : index
    %c0_8 = arith.constant 0 : index
    %c0_9 = arith.constant 0 : index
    %7 = vector.load %arg3[%c0_7, %c0_8, %c0_9] : memref<3x128x64xbf16, #tpu.memory_space<vmem>>, vector<1x128x64xbf16>
    %8 = vector.shape_cast %7 : vector<1x128x64xbf16> to vector<128x64xbf16>
    %cst_10 = arith.constant dense<0.000000e+00> : vector<128x16xf32>
    %9 = tpu.matmul %8, %6, %cst_10 {dimension_numbers = #tpu.dot_dimension_numbers<[1], [0], [0], [1], [0, 0, 1, 1], [], []>} : vector<128x64xbf16>, vector<64x16xbf16>, vector<128x16xf32> -> vector<128x16xf32>
    %c1 = arith.constant 1 : index
    %c0_11 = arith.constant 0 : index
    %c0_12 = arith.constant 0 : index
    %10 = vector.load %arg2[%c1, %c0_11, %c0_12] : memref<3x16x16xbf16, #tpu.memory_space<vmem>>, vector<1x16x16xbf16>
    %11 = vector.shape_cast %10 : vector<1x16x16xbf16> to vector<16x16xbf16>
    %cst_13 = arith.constant dense<0.000000e+00> : vector<64x16xf32>
    %12 = tpu.matmul %1, %11, %cst_13 {dimension_numbers = #tpu.dot_dimension_numbers<[1], [0], [0], [1], [0, 0, 1, 1], [], []>} : vector<64x16xbf16>, vector<16x16xbf16>, vector<64x16xf32> -> vector<64x16xf32>
    %13 = arith.truncf %12 : vector<64x16xf32> to vector<64x16xbf16>
    %c1_14 = arith.constant 1 : index
    %c0_15 = arith.constant 0 : index
    %c0_16 = arith.constant 0 : index
    %14 = vector.load %arg3[%c1_14, %c0_15, %c0_16] : memref<3x128x64xbf16, #tpu.memory_space<vmem>>, vector<1x128x64xbf16>
    %15 = vector.shape_cast %14 : vector<1x128x64xbf16> to vector<128x64xbf16>
    %cst_17 = arith.constant dense<0.000000e+00> : vector<128x16xf32>
    %16 = tpu.matmul %15, %13, %cst_17 {dimension_numbers = #tpu.dot_dimension_numbers<[1], [0], [0], [1], [0, 0, 1, 1], [], []>} : vector<128x64xbf16>, vector<64x16xbf16>, vector<128x16xf32> -> vector<128x16xf32>
    %17 = arith.addf %9, %16 : vector<128x16xf32>
    %c2 = arith.constant 2 : index
    %c0_18 = arith.constant 0 : index
    %c0_19 = arith.constant 0 : index
    %18 = vector.load %arg2[%c2, %c0_18, %c0_19] : memref<3x16x16xbf16, #tpu.memory_space<vmem>>, vector<1x16x16xbf16>
    %19 = vector.shape_cast %18 : vector<1x16x16xbf16> to vector<16x16xbf16>
    %cst_20 = arith.constant dense<0.000000e+00> : vector<64x16xf32>
    %20 = tpu.matmul %1, %19, %cst_20 {dimension_numbers = #tpu.dot_dimension_numbers<[1], [0], [0], [1], [0, 0, 1, 1], [], []>} : vector<64x16xbf16>, vector<16x16xbf16>, vector<64x16xf32> -> vector<64x16xf32>
    %21 = arith.truncf %20 : vector<64x16xf32> to vector<64x16xbf16>
    %c2_21 = arith.constant 2 : index
    %c0_22 = arith.constant 0 : index
    %c0_23 = arith.constant 0 : index
    %22 = vector.load %arg3[%c2_21, %c0_22, %c0_23] : memref<3x128x64xbf16, #tpu.memory_space<vmem>>, vector<1x128x64xbf16>
    %23 = vector.shape_cast %22 : vector<1x128x64xbf16> to vector<128x64xbf16>
    %cst_24 = arith.constant dense<0.000000e+00> : vector<128x16xf32>
    %24 = tpu.matmul %23, %21, %cst_24 {dimension_numbers = #tpu.dot_dimension_numbers<[1], [0], [0], [1], [0, 0, 1, 1], [], []>} : vector<128x64xbf16>, vector<64x16xbf16>, vector<128x16xf32> -> vector<128x16xf32>
    %25 = arith.addf %17, %24 : vector<128x16xf32>
    %26 = vector.extract_strided_slice %2 {offsets = [0, 0], sizes = [128, 1], strides = [1, 1]} : vector<128x3xf32> to vector<128x1xf32>
    %27 = vector.broadcast %26 : vector<128x1xf32> to vector<128x16xf32>
    %28 = arith.addf %25, %27 : vector<128x16xf32>
    %cst_25 = arith.constant 0.000000e+00 : f32
    %29 = vector.broadcast %cst_25 : f32 to vector<128x16xf32>
    %30 = arith.maximumf %28, %29 : vector<128x16xf32>
    %31 = arith.truncf %30 : vector<128x16xf32> to vector<128x16xbf16>
    %c0_26 = arith.constant 0 : index
    %c0_27 = arith.constant 0 : index
    %32 = vector.load %arg4[%c0_26, %c0_27] : memref<128x128xbf16, #tpu.memory_space<vmem>>, vector<128x128xbf16>
    %cst_28 = arith.constant dense<0.000000e+00> : vector<128x16xf32>
    %33 = tpu.matmul %32, %31, %cst_28 {dimension_numbers = #tpu.dot_dimension_numbers<[1], [0], [0], [1], [0, 0, 1, 1], [], []>} : vector<128x128xbf16>, vector<128x16xbf16>, vector<128x16xf32> -> vector<128x16xf32>
    %34 = vector.extract_strided_slice %2 {offsets = [0, 1], sizes = [128, 1], strides = [1, 1]} : vector<128x3xf32> to vector<128x1xf32>
    %35 = vector.broadcast %34 : vector<128x1xf32> to vector<128x16xf32>
    %36 = arith.addf %33, %35 : vector<128x16xf32>
    %cst_29 = arith.constant 0.000000e+00 : f32
    %37 = vector.broadcast %cst_29 : f32 to vector<128x16xf32>
    %38 = arith.maximumf %36, %37 : vector<128x16xf32>
    %c0_30 = arith.constant 0 : index
    %c0_31 = arith.constant 0 : index
    %39 = vector.load %arg5[%c0_30, %c0_31] : memref<128x64xbf16, #tpu.memory_space<vmem>>, vector<128x64xbf16>
    %cst_32 = arith.constant dense<0.000000e+00> : vector<128x16xf32>
    %40 = tpu.matmul %39, %1, %cst_32 {dimension_numbers = #tpu.dot_dimension_numbers<[1], [0], [0], [1], [0, 0, 1, 1], [], []>} : vector<128x64xbf16>, vector<64x16xbf16>, vector<128x16xf32> -> vector<128x16xf32>
    %41 = vector.extract_strided_slice %2 {offsets = [0, 2], sizes = [128, 1], strides = [1, 1]} : vector<128x3xf32> to vector<128x1xf32>
    %42 = vector.broadcast %41 : vector<128x1xf32> to vector<128x16xf32>
    %43 = arith.addf %40, %42 : vector<128x16xf32>
    %cst_33 = arith.constant 0.000000e+00 : f32
    %44 = vector.broadcast %cst_33 : f32 to vector<128x16xf32>
    %45 = arith.maximumf %43, %44 : vector<128x16xf32>
    %46 = arith.addf %38, %45 : vector<128x16xf32>
    %c0_34 = arith.constant 0 : index
    %c0_35 = arith.constant 0 : index
    %c0_36 = arith.constant 0 : index
    %47 = vector.load %arg7[%c0_34, %c0_35, %c0_36] : memref<1x128x16xf32, #tpu.memory_space<vmem>>, vector<1x128x16xf32>
    %48 = vector.shape_cast %47 : vector<1x128x16xf32> to vector<128x16xf32>
    %49 = vector.shape_cast %46 : vector<128x16xf32> to vector<1x128x16xf32>
    tpu.vector_store %arg7[%c0_34, %c0_35, %c0_36], %49 {strides = array<i32>} : memref<1x128x16xf32, #tpu.memory_space<vmem>>, vector<1x128x16xf32>,
    return
  }
  func.func @transform_0(%arg0: i32) -> (i32, i32, i32) {
    %c0_i32 = arith.constant 0 : i32
    %c0_i32_0 = arith.constant 0 : i32
    %c0_i32_1 = arith.constant 0 : i32
    return %arg0, %c0_i32, %c0_i32_0 : i32, i32, i32
  }
  func.func @transform_1(%arg0: i32) -> (i32, i32, i32) {
    %c0_i32 = arith.constant 0 : i32
    %c0_i32_0 = arith.constant 0 : i32
    %c0_i32_1 = arith.constant 0 : i32
    %c0_i32_2 = arith.constant 0 : i32
    return %c0_i32, %c0_i32_0, %c0_i32_1 : i32, i32, i32
  }
  func.func @transform_2(%arg0: i32) -> (i32, i32, i32) {
    %c0_i32 = arith.constant 0 : i32
    %c0_i32_0 = arith.constant 0 : i32
    %c0_i32_1 = arith.constant 0 : i32
    %c0_i32_2 = arith.constant 0 : i32
    return %c0_i32, %c0_i32_0, %c0_i32_1 : i32, i32, i32
  }
  func.func @transform_3(%arg0: i32) -> (i32, i32) {
    %c0_i32 = arith.constant 0 : i32
    %c0_i32_0 = arith.constant 0 : i32
    %c0_i32_1 = arith.constant 0 : i32
    return %c0_i32, %c0_i32_0 : i32, i32
  }
  func.func @transform_4(%arg0: i32) -> (i32, i32) {
    %c0_i32 = arith.constant 0 : i32
    %c0_i32_0 = arith.constant 0 : i32
    %c0_i32_1 = arith.constant 0 : i32
    return %c0_i32, %c0_i32_0 : i32, i32
  }
  func.func @transform_5(%arg0: i32) -> (i32, i32) {
    %c0_i32 = arith.constant 0 : i32
    %c0_i32_0 = arith.constant 0 : i32
    %c0_i32_1 = arith.constant 0 : i32
    return %c0_i32, %c0_i32_0 : i32, i32
  }
  func.func @transform_6(%arg0: i32) -> (i32, i32, i32) {
    %c0_i32 = arith.constant 0 : i32
    %c0_i32_0 = arith.constant 0 : i32
    %c0_i32_1 = arith.constant 0 : i32
    return %arg0, %c0_i32, %c0_i32_0 : i32, i32, i32
  }
}

</mosaic_0001>

<llo_original>
// kernel: tpu_custom_call.1
$region0: #{tpu_custom_call.1}
  #allocation0 [shape = 'u32[]', space=smem, size = 0x4, offset = 0x4, fixed_abs, tag = 'smem constant byte address 0x4 - core index']
  #allocation1 [shape = 'u32[72,128]{1,0:T(1,128)}', space=vmem, size = 0x9000, scoped, tag = 'internal scratch']
  %s0 = inlined_call_operand.vmem [shape: bf16[2,64,16], index: 0, kind: input, shape index: {}]
  %s1 = inlined_call_operand.vmem [shape: bf16[3,16,16], index: 1, kind: input, shape index: {}]
  %s2 = inlined_call_operand.vmem [shape: bf16[3,128,64], index: 2, kind: input, shape index: {}]
  %s3 = inlined_call_operand.vmem [shape: bf16[128,128], index: 3, kind: input, shape index: {}]
  %s4 = inlined_call_operand.vmem [shape: bf16[128,64], index: 4, kind: input, shape index: {}]
  %s5 = inlined_call_operand.vmem [shape: f32[128,3], index: 5, kind: input, shape index: {}]
  %s6 = inlined_call_operand.vmem [shape: f32[2,128,16], index: 6, kind: output, shape index: {}]
  %s7 = sld [smem:[#allocation0]]
  $region57: #{tpu_custom_call.1} parent=0
    _
  %s9 = ssub.s32 1, %s7
  %s10 = scalar_select 0, %s9, %s7
  loop: start=0, step=1, limit=4
  $region2: #{tpu_custom_call.1} parent=0 // loop_pre_header
    _
  $region3: #{tpu_custom_call.1} parent=0 // loop_header
    %s12 = sphi 0, %s16
    %p13 = scmp.ge.s32.totalorder %s12, 4
    %s22 = sphi 0, %s24
    %s25 = sphi 0, %s22
    %s26 = sphi 0, %s25
    %s42 = sphi 0, %s26
    %s46 = sphi 0, %s46
    %s48 = sphi 0, %s46
    %s49 = sphi 0, %s48
    %s63 = sphi 0, %s49
    %s67 = sphi 0, %s67
    %s69 = sphi 0, %s67
    %s70 = sphi 0, %s69
    %s84 = sphi 0, %s70
    %s88 = sphi 0, %s88
    %s90 = sphi 0, %s88
    %s91 = sphi 0, %s90
    %s105 = sphi 0, %s91
    %s109 = sphi 0, %s109
    %s111 = sphi 0, %s109
    %s112 = sphi 0, %s111
    %s126 = sphi 0, %s112
    %s130 = sphi 0, %s130
    %s132 = sphi 0, %s130
    %s133 = sphi 0, %s132
    %s147 = sphi 0, %s133
    %s153 = sphi 0, %s155
    %s156 = sphi 0, %s153
    %s157 = sphi 0, %s156
    %s173 = sphi 0, %s157
  $region4: #{tpu_custom_call.1} parent=0 // loop_header_branch
    %15 = sbr.rel (%p13) target = $region8
  $region5: #{tpu_custom_call.1} parent=0 // loop_body
    %s17 = ssub.s32 %s12, 1
    %s18 = ssub.s32 %s12, 2
    %s19 = sadd.s32 %s12, 1
    %s20 = ssub.s32 %s12, %s19
    %p21 = scmp.eq.s32.totalorder %s20, 0
    %s23 = sadd.s32 %s22, 1
    %s24 = scalar_select %p21, %s22, %s23
    %p27 = pneg %p21
    %p28 = scmp.eq.s32.totalorder %s12, 1
    %p29 = por %p27, %p28
    %p30 = scmp.ne.s32.totalorder %s22, %s25
    %p31 = scmp.eq.s32.totalorder %s12, 0
    %p32 = por %p30, %p31
    %p33 = scmp.ne.s32.totalorder %s22, %s25
    %p34 = scmp.eq.s32.totalorder %s17, 1
    %p35 = por %p33, %p34
    %p36 = scmp.ne.s32.totalorder %s25, %s26
    %p37 = scmp.eq.s32.totalorder %s17, 0
    %p38 = por %p36, %p37
    %p39 = scmp.ne.s32.totalorder %s25, %s26
    %p40 = scmp.eq.s32.totalorder %s18, 1
    %p41 = por %p39, %p40
    %p43 = scmp.ne.s32.totalorder %s26, %s42
    %p44 = scmp.eq.s32.totalorder %s18, 0
    %p45 = por %p43, %p44
    %s47 = sadd.s32 %s46, 1
    %p50 = scmp.eq.s32.totalorder %s12, 1
    %p51 = scmp.ne.s32.totalorder %s46, %s48
    %p52 = scmp.eq.s32.totalorder %s12, 0
    %p53 = por %p51, %p52
    %p54 = scmp.ne.s32.totalorder %s46, %s48
    %p55 = scmp.eq.s32.totalorder %s17, 1
    %p56 = por %p54, %p55
    %p57 = scmp.ne.s32.totalorder %s48, %s49
    %p58 = scmp.eq.s32.totalorder %s17, 0
    %p59 = por %p57, %p58
    %p60 = scmp.ne.s32.totalorder %s48, %s49
    %p61 = scmp.eq.s32.totalorder %s18, 1
    %p62 = por %p60, %p61
    %p64 = scmp.ne.s32.totalorder %s49, %s63
    %p65 = scmp.eq.s32.totalorder %s18, 0
    %p66 = por %p64, %p65
    %s68 = sadd.s32 %s67, 1
    %p71 = scmp.eq.s32.totalorder %s12, 1
    %p72 = scmp.ne.s32.totalorder %s67, %s69
    %p73 = scmp.eq.s32.totalorder %s12, 0
    %p74 = por %p72, %p73
    %p75 = scmp.ne.s32.totalorder %s67, %s69
    %p76 = scmp.eq.s32.totalorder %s17, 1
    %p77 = por %p75, %p76
    %p78 = scmp.ne.s32.totalorder %s69, %s70
    %p79 = scmp.eq.s32.totalorder %s17, 0
    %p80 = por %p78, %p79
    %p81 = scmp.ne.s32.totalorder %s69, %s70
    %p82 = scmp.eq.s32.totalorder %s18, 1
    %p83 = por %p81, %p82
    %p85 = scmp.ne.s32.totalorder %s70, %s84
    %p86 = scmp.eq.s32.totalorder %s18, 0
    %p87 = por %p85, %p86
    %s89 = sadd.s32 %s88, 1
    %p92 = scmp.eq.s32.totalorder %s12, 1
    %p93 = scmp.ne.s32.totalorder %s88, %s90
    %p94 = scmp.eq.s32.totalorder %s12, 0
    %p95 = por %p93, %p94
    %p96 = scmp.ne.s32.totalorder %s88, %s90
    %p97 = scmp.eq.s32.totalorder %s17, 1
    %p98 = por %p96, %p97
    %p99 = scmp.ne.s32.totalorder %s90, %s91
    %p100 = scmp.eq.s32.totalorder %s17, 0
    %p101 = por %p99, %p100
    %p102 = scmp.ne.s32.totalorder %s90, %s91
    %p103 = scmp.eq.s32.totalorder %s18, 1
    %p104 = por %p102, %p103
    %p106 = scmp.ne.s32.totalorder %s91, %s105
    %p107 = scmp.eq.s32.totalorder %s18, 0
    %p108 = por %p106, %p107
    %s110 = sadd.s32 %s109, 1
    %p113 = scmp.eq.s32.totalorder %s12, 1
    %p114 = scmp.ne.s32.totalorder %s109, %s111
    %p115 = scmp.eq.s32.totalorder %s12, 0
    %p116 = por %p114, %p115
    %p117 = scmp.ne.s32.totalorder %s109, %s111
    %p118 = scmp.eq.s32.totalorder %s17, 1
    %p119 = por %p117, %p118
    %p120 = scmp.ne.s32.totalorder %s111, %s112
    %p121 = scmp.eq.s32.totalorder %s17, 0
    %p122 = por %p120, %p121
    %p123 = scmp.ne.s32.totalorder %s111, %s112
    %p124 = scmp.eq.s32.totalorder %s18, 1
    %p125 = por %p123, %p124
    %p127 = scmp.ne.s32.totalorder %s112, %s126
    %p128 = scmp.eq.s32.totalorder %s18, 0
    %p129 = por %p127, %p128
    %s131 = sadd.s32 %s130, 1
    %p134 = scmp.eq.s32.totalorder %s12, 1
    %p135 = scmp.ne.s32.totalorder %s130, %s132
    %p136 = scmp.eq.s32.totalorder %s12, 0
    %p137 = por %p135, %p136
    %p138 = scmp.ne.s32.totalorder %s130, %s132
    %p139 = scmp.eq.s32.totalorder %s17, 1
    %p140 = por %p138, %p139
    %p141 = scmp.ne.s32.totalorder %s132, %s133
    %p142 = scmp.eq.s32.totalorder %s17, 0
    %p143 = por %p141, %p142
    %p144 = scmp.ne.s32.totalorder %s132, %s133
    %p145 = scmp.eq.s32.totalorder %s18, 1
    %p146 = por %p144, %p145
    %p148 = scmp.ne.s32.totalorder %s133, %s147
    %p149 = scmp.eq.s32.totalorder %s18, 0
    %p150 = por %p148, %p149
    %s151 = ssub.s32 %s12, %s19
    %p152 = scmp.eq.s32.totalorder %s151, 0
    %s154 = sadd.s32 %s153, 1
    %s155 = scalar_select %p152, %s153, %s154
    %p158 = pneg %p152
    %p159 = scmp.eq.s32.totalorder %s12, 1
    %p160 = por %p158, %p159
    %p161 = scmp.ne.s32.totalorder %s153, %s156
    %p162 = scmp.eq.s32.totalorder %s12, 0
    %p163 = por %p161, %p162
    %p164 = scmp.ne.s32.totalorder %s153, %s156
    %p165 = scmp.eq.s32.totalorder %s17, 1
    %p166 = por %p164, %p165
    %p167 = scmp.ne.s32.totalorder %s156, %s157
    %p168 = scmp.eq.s32.totalorder %s17, 0
    %p169 = por %p167, %p168
    %p170 = scmp.ne.s32.totalorder %s156, %s157
    %p171 = scmp.eq.s32.totalorder %s18, 1
    %p172 = por %p170, %p171
    %p174 = scmp.ne.s32.totalorder %s157, %s173
    %p175 = scmp.eq.s32.totalorder %s18, 0
    %p176 = por %p174, %p175
    %p177 = scmp.le.s32.totalorder 1, %s12
    %p178 = scmp.lt.s32.totalorder %s12, 3
    %p179 = pnand %p177, %p178
    %p180 = pneg %p179
    // Predicated region
    $region9: #{tpu_custom_call.1} parent=5 // pred_check
      _
    $region10: #{tpu_custom_call.1} parent=5 // pred_check_branch
      %182 = sbr.rel (%p179) target = $region12
    $region11: #{tpu_custom_call.1} parent=5 // pred_region
      %s183 = ssub.s32 %s12, 1
      // Predicated region
      $region13: #{tpu_custom_call.1} parent=11 // pred_check
        %p184 = pneg %p59
      $region14: #{tpu_custom_call.1} parent=11 // pred_check_branch
        %186 = sbr.rel (%p184) target = $region16
      $region15: #{tpu_custom_call.1} parent=11 // pred_region
        _
      $region16: #{tpu_custom_call.1} parent=11 // pred_fallthru
        _
      // Predicated region
      $region17: #{tpu_custom_call.1} parent=11 // pred_check
        %p187 = pneg %p80
      $region18: #{tpu_custom_call.1} parent=11 // pred_check_branch
        %189 = sbr.rel (%p187) target = $region20
      $region19: #{tpu_custom_call.1} parent=11 // pred_region
        _
      $region20: #{tpu_custom_call.1} parent=11 // pred_fallthru
        _
      // Predicated region
      $region21: #{tpu_custom_call.1} parent=11 // pred_check
        %p190 = pneg %p101
      $region22: #{tpu_custom_call.1} parent=11 // pred_check_branch
        %192 = sbr.rel (%p190) target = $region24
      $region23: #{tpu_custom_call.1} parent=11 // pred_region
        _
      $region24: #{tpu_custom_call.1} parent=11 // pred_fallthru
        _
      // Predicated region
      $region25: #{tpu_custom_call.1} parent=11 // pred_check
        %p193 = pneg %p122
      $region26: #{tpu_custom_call.1} parent=11 // pred_check_branch
        %195 = sbr.rel (%p193) target = $region28
      $region27: #{tpu_custom_call.1} parent=11 // pred_region
        _
      $region28: #{tpu_custom_call.1} parent=11 // pred_fallthru
        _
      // Predicated region
      $region29: #{tpu_custom_call.1} parent=11 // pred_check
        %p196 = pneg %p143
      $region30: #{tpu_custom_call.1} parent=11 // pred_check_branch
        %198 = sbr.rel (%p196) target = $region32
      $region31: #{tpu_custom_call.1} parent=11 // pred_region
        _
      $region32: #{tpu_custom_call.1} parent=11 // pred_fallthru
        _
    $region12: #{tpu_custom_call.1} parent=5 // pred_fallthru
      _
    %p199 = scmp.lt.s32.totalorder %s12, 2
    // Predicated region
    $region33: #{tpu_custom_call.1} parent=5 // pred_check
      %p200 = pneg %p199
    $region34: #{tpu_custom_call.1} parent=5 // pred_check_branch
      %202 = sbr.rel (%p200) target = $region36
    $region35: #{tpu_custom_call.1} parent=5 // pred_region
      // Predicated region
      $region37: #{tpu_custom_call.1} parent=35 // pred_check
        %p203 = pneg %p32
      $region38: #{tpu_custom_call.1} parent=35 // pred_check_branch
        %205 = sbr.rel (%p203) target = $region40
      $region39: #{tpu_custom_call.1} parent=35 // pred_region
        %p206 = scmp.lt.s32.totalorder %s12, 1
        %s207 = scalar_select %p206, %s12, 1
        %s208 = smul.addr %s207, 8
        %s209 = smul.addr %s208, 4
        %s210 = scalar_lea.vmem %s0, %s209
      $region40: #{tpu_custom_call.1} parent=35 // pred_fallthru
        _
    $region36: #{tpu_custom_call.1} parent=5 // pred_fallthru
      _
    %p211 = scmp.le.s32.totalorder 1, %s12
    %p212 = scmp.lt.s32.totalorder %s12, 3
    %p213 = pnand %p211, %p212
    %p214 = pneg %p213
    // Predicated region
    $region41: #{tpu_custom_call.1} parent=5 // pred_check
      _
    $region42: #{tpu_custom_call.1} parent=5 // pred_check_branch
      %216 = sbr.rel (%p213) target = $region44
    $region43: #{tpu_custom_call.1} parent=5 // pred_region
      %s217 = ssub.s32 %s12, 1
      %p218 = scmp.lt.s32.totalorder %s17, 1
      %s219 = scalar_select %p218, %s17, 1
      %s220 = smul.addr %s219, 8
      %s221 = smul.addr %s220, 4
      %s222 = scalar_lea.vmem %s0, %s221
      %p223 = pneg %p38
      %p224 = pneg %p35
      %p225 = pneg %p59
      %p226 = pneg %p56
      %p227 = pneg %p80
      %p228 = pneg %p77
      %p229 = pneg %p101
      %p230 = pneg %p98
      %p231 = pneg %p122
      %p232 = pneg %p119
      %p233 = pneg %p143
      %p234 = pneg %p140
      %p235 = pneg %p169
      %p236 = pneg %p166
      %p237 = scmp.lt.s32.totalorder %s17, 1
      %s238 = scalar_select %p237, %s17, 1
      %s239 = smul.addr %s238, 16
      %s240 = smul.addr %s239, 8
      %s241 = scalar_lea.vmem %s6, %s240
      %p242 = scmp.lt.s32.totalorder %s17, 1
      %s243 = scalar_select %p242, %s17, 1
      %s244 = smul.addr %s243, 8
      %s245 = smul.addr %s244, 4
      %s246 = scalar_lea.vmem %s0, %s245
      %p247 = scmp.lt.s32.totalorder %s17, 1
      %s248 = scalar_select %p247, %s17, 1
      %s249 = smul.addr %s248, 16
      %s250 = smul.addr %s249, 8
      %s251 = scalar_lea.vmem %s6, %s250
      %v253 = vld [vmem:[%s246] sm:$0xf]
      %v254 = vld [vmem:[%s246 + $0x4] sm:$0xf]
      %v255 = vld [vmem:[%s246 + $0x8] sm:$0xf]
      %v256 = vld [vmem:[%s246 + $0xc] sm:$0xf]
      %v257 = vld [vmem:[%s246 + $0x10] sm:$0xf]
      %v258 = vld [vmem:[%s246 + $0x14] sm:$0xf]
      %v259 = vld [vmem:[%s246 + $0x18] sm:$0xf]
      %v260 = vld [vmem:[%s246 + $0x1c] sm:$0xf]
      %v261 = vld [vmem:[%s5] sm:$0xff]
      %v262 = vld [vmem:[%s5 + $0x8] sm:$0xff]
      %v263 = vld [vmem:[%s5 + $0x10] sm:$0xff]
      %v264 = vld [vmem:[%s5 + $0x18] sm:$0xff]
      %v265 = vld [vmem:[%s5 + $0x20] sm:$0xff]
      %v266 = vld [vmem:[%s5 + $0x28] sm:$0xff]
      %v267 = vld [vmem:[%s5 + $0x30] sm:$0xff]
      %v268 = vld [vmem:[%s5 + $0x38] sm:$0xff]
      %v269 = vld [vmem:[%s5 + $0x40] sm:$0xff]
      %v270 = vld [vmem:[%s5 + $0x48] sm:$0xff]
      %v271 = vld [vmem:[%s5 + $0x50] sm:$0xff]
      %v272 = vld [vmem:[%s5 + $0x58] sm:$0xff]
      %v273 = vld [vmem:[%s5 + $0x60] sm:$0xff]
      %v274 = vld [vmem:[%s5 + $0x68] sm:$0xff]
      %v275 = vld [vmem:[%s5 + $0x70] sm:$0xff]
      %v276 = vld [vmem:[%s5 + $0x78] sm:$0xff]
      %v277 = vld [vmem:[%s1] sm:$0xf]
      %v278 = vld [vmem:[%s1 + $0x4] sm:$0xf]
      %v287 = vunpack.c.l.b16 %v253
      %v288 = vunpack.c.l.b16 %v254
      %v289 = vunpack.c.l.b16 %v255
      %v290 = vunpack.c.l.b16 %v256
      %v291 = vunpack.c.l.b16 %v257
      %v292 = vunpack.c.l.b16 %v258
      %v293 = vunpack.c.l.b16 %v259
      %v294 = vunpack.c.l.b16 %v260
      %v295 = vpack.c.b16 %v288, %v287
      %v296 = vpack.c.b16 %v290, %v289
      %v297 = vpack.c.b16 %v292, %v291
      %v298 = vpack.c.b16 %v294, %v293
      %v301 = vunpack.c.l.b16 %v277
      %v302 = vunpack.c.l.b16 %v278
      %v303 = vpack.c.b16 %v302, %v301
      %vm305 = vcmask 130048
      %v307 = vsel %vm305, %v295, 0
      %v310 = vsel %vm305, %v296, 0
      %v313 = vsel %vm305, %v297, 0
      %v316 = vsel %vm305, %v298, 0
      %318 = vmatpush.bf16.msra.mxu0 0
      %319 = vmatpush.bf16.msra.mxu0 0
      %320 = vmatpush.bf16.msra.mxu0 0
      %321 = vmatpush.bf16.msra.mxu0 0
      %322 = vmatpush.bf16.msra.mxu0 0
      %323 = vmatpush.bf16.msra.mxu0 0
      %324 = vmatpush.bf16.msra.mxu0 0
      %325 = vmatpush.bf16.msra.mxu0 %v303
      %326 = vmatmul.bf16.gmra.mxu0 %v307
      %v327 = vpop.f32.mrf.mxu0
      %v328 = vadd.f32 0.0, %v327
      %v329 = vpop.f32.mrf.mxu0
      %v330 = vadd.f32 0.0, %v329
      %331 = vmatmul.bf16.gmra.mxu0 %v310
      %v332 = vpop.f32.mrf.mxu0
      %v333 = vadd.f32 0.0, %v332
      %v334 = vpop.f32.mrf.mxu0
      %v335 = vadd.f32 0.0, %v334
      %336 = vmatmul.bf16.gmra.mxu0 %v313
      %v337 = vpop.f32.mrf.mxu0
      %v338 = vadd.f32 0.0, %v337
      %v339 = vpop.f32.mrf.mxu0
      %v340 = vadd.f32 0.0, %v339
      %341 = vmatmul.bf16.gmra.mxu0 %v316
      %v342 = vpop.f32.mrf.mxu0
      %v343 = vadd.f32 0.0, %v342
      %v344 = vpop.f32.mrf.mxu0
      %v345 = vadd.f32 0.0, %v344
      %346 = vdwg.mxu0
      %v347 = vpack.c.bf16 %v330, %v328
      %v348 = vpack.c.bf16 %v335, %v333
      %v349 = vpack.c.bf16 %v340, %v338
      %v350 = vpack.c.bf16 %v345, %v343
      %v351 = vld [vmem:[%s2] sm:$0xf]
      %v352 = vld [vmem:[%s2 + $0x4] sm:$0xf]
      %v353 = vld [vmem:[%s2 + $0x8] sm:$0xf]
      %v354 = vld [vmem:[%s2 + $0xc] sm:$0xf]
      %v355 = vld [vmem:[%s2 + $0x10] sm:$0xf]
      %v356 = vld [vmem:[%s2 + $0x14] sm:$0xf]
      %v357 = vld [vmem:[%s2 + $0x18] sm:$0xf]
      %v358 = vld [vmem:[%s2 + $0x1c] sm:$0xf]
      %v359 = vld [vmem:[%s2 + $0x20] sm:$0xf]
      %v360 = vld [vmem:[%s2 + $0x24] sm:$0xf]
      %v361 = vld [vmem:[%s2 + $0x28] sm:$0xf]
      %v362 = vld [vmem:[%s2 + $0x2c] sm:$0xf]
      %v363 = vld [vmem:[%s2 + $0x30] sm:$0xf]
      %v364 = vld [vmem:[%s2 + $0x34] sm:$0xf]
      %v365 = vld [vmem:[%s2 + $0x38] sm:$0xf]
      %v366 = vld [vmem:[%s2 + $0x3c] sm:$0xf]
      %s367 = scalar_lea.vmem %s1, 8
      %v368 = vld [vmem:[%s367] sm:$0xf]
      %v369 = vld [vmem:[%s367 + $0x4] sm:$0xf]
      %v372 = vunpack.c.l.b16 %v368
      %v373 = vunpack.c.l.b16 %v369
      %v374 = vpack.c.b16 %v373, %v372
      %376 = vmatpush.bf16.msra.mxu0 0
      %377 = vmatpush.bf16.msra.mxu0 0
      %378 = vmatpush.bf16.msra.mxu0 0
      %379 = vmatpush.bf16.msra.mxu0 0
      %380 = vmatpush.bf16.msra.mxu0 0
      %381 = vmatpush.bf16.msra.mxu0 0
      %382 = vmatpush.bf16.msra.mxu0 0
      %383 = vmatpush.bf16.msra.mxu0 %v374
      %384 = vmatmul.bf16.gmra.mxu0 %v307
      %v385 = vpop.f32.mrf.mxu0
      %v386 = vadd.f32 0.0, %v385
      %v387 = vpop.f32.mrf.mxu0
      %v388 = vadd.f32 0.0, %v387
      %389 = vmatmul.bf16.gmra.mxu0 %v310
      %v390 = vpop.f32.mrf.mxu0
      %v391 = vadd.f32 0.0, %v390
      %v392 = vpop.f32.mrf.mxu0
      %v393 = vadd.f32 0.0, %v392
      %394 = vmatmul.bf16.gmra.mxu0 %v313
      %v395 = vpop.f32.mrf.mxu0
      %v396 = vadd.f32 0.0, %v395
      %v397 = vpop.f32.mrf.mxu0
      %v398 = vadd.f32 0.0, %v397
      %399 = vmatmul.bf16.gmra.mxu0 %v316
      %v400 = vpop.f32.mrf.mxu0
      %v401 = vadd.f32 0.0, %v400
      %v402 = vpop.f32.mrf.mxu0
      %v403 = vadd.f32 0.0, %v402
      %404 = vdwg.mxu0
      %v405 = vpack.c.bf16 %v388, %v386
      %v406 = vpack.c.bf16 %v393, %v391
      %v407 = vpack.c.bf16 %v398, %v396
      %v408 = vpack.c.bf16 %v403, %v401
      %s409 = scalar_lea.vmem %s2, 64
      %v410 = vld [vmem:[%s409] sm:$0xf]
      %v411 = vld [vmem:[%s409 + $0x4] sm:$0xf]
      %v412 = vld [vmem:[%s409 + $0x8] sm:$0xf]
      %v413 = vld [vmem:[%s409 + $0xc] sm:$0xf]
      %v414 = vld [vmem:[%s409 + $0x10] sm:$0xf]
      %v415 = vld [vmem:[%s409 + $0x14] sm:$0xf]
      %v416 = vld [vmem:[%s409 + $0x18] sm:$0xf]
      %v417 = vld [vmem:[%s409 + $0x1c] sm:$0xf]
      %v418 = vld [vmem:[%s409 + $0x20] sm:$0xf]
      %v419 = vld [vmem:[%s409 + $0x24] sm:$0xf]
      %v420 = vld [vmem:[%s409 + $0x28] sm:$0xf]
      %v421 = vld [vmem:[%s409 + $0x2c] sm:$0xf]
      %v422 = vld [vmem:[%s409 + $0x30] sm:$0xf]
      %v423 = vld [vmem:[%s409 + $0x34] sm:$0xf]
      %v424 = vld [vmem:[%s409 + $0x38] sm:$0xf]
      %v425 = vld [vmem:[%s409 + $0x3c] sm:$0xf]
      %v442 = vunpack.c.l.b16 %v410
      %v443 = vunpack.c.l.b16 %v411
      %v444 = vunpack.c.l.b16 %v412
      %v445 = vunpack.c.l.b16 %v413
      %v446 = vunpack.c.l.b16 %v414
      %v447 = vunpack.c.l.b16 %v415
      %v448 = vunpack.c.l.b16 %v416
      %v449 = vunpack.c.l.b16 %v417
      %v450 = vunpack.c.l.b16 %v418
      %v451 = vunpack.c.l.b16 %v419
      %v452 = vunpack.c.l.b16 %v420
      %v453 = vunpack.c.l.b16 %v421
      %v454 = vunpack.c.l.b16 %v422
      %v455 = vunpack.c.l.b16 %v423
      %v456 = vunpack.c.l.b16 %v424
      %v457 = vunpack.c.l.b16 %v425
      %v458 = vpack.c.b16 %v443, %v442
      %v459 = vpack.c.b16 %v445, %v444
      %v460 = vpack.c.b16 %v447, %v446
      %v461 = vpack.c.b16 %v449, %v448
      %v462 = vpack.c.b16 %v451, %v450
      %v463 = vpack.c.b16 %v453, %v452
      %v464 = vpack.c.b16 %v455, %v454
      %v465 = vpack.c.b16 %v457, %v456
      %vm466 = vcmask 523264
      %v468 = vsel %vm466, %v458, 0
      %v471 = vsel %vm466, %v459, 0
      %v474 = vsel %vm466, %v460, 0
      %v477 = vsel %vm466, %v461, 0
      %v480 = vsel %vm466, %v462, 0
      %v483 = vsel %vm466, %v463, 0
      %v486 = vsel %vm466, %v464, 0
      %v489 = vsel %vm466, %v465, 0
      %491 = vmatpush.bf16.msra.mxu0 0
      %492 = vmatpush.bf16.msra.mxu0 0
      %493 = vmatpush.bf16.msra.mxu0 0
      %494 = vmatpush.bf16.msra.mxu0 0
      %495 = vmatpush.bf16.msra.mxu0 %v408
      %496 = vmatpush.bf16.msra.mxu0 %v407
      %497 = vmatpush.bf16.msra.mxu0 %v406
      %498 = vmatpush.bf16.msra.mxu0 %v405
      %499 = vmatmul.bf16.gmra.mxu0 %v468
      %v500 = vpop.f32.mrf.mxu0
      %v501 = vadd.f32 0.0, %v500
      %v502 = vpop.f32.mrf.mxu0
      %v503 = vadd.f32 0.0, %v502
      %504 = vmatmul.bf16.gmra.mxu0 %v471
      %v505 = vpop.f32.mrf.mxu0
      %v506 = vadd.f32 0.0, %v505
      %v507 = vpop.f32.mrf.mxu0
      %v508 = vadd.f32 0.0, %v507
      %509 = vmatmul.bf16.gmra.mxu0 %v474
      %v510 = vpop.f32.mrf.mxu0
      %v511 = vadd.f32 0.0, %v510
      %v512 = vpop.f32.mrf.mxu0
      %v513 = vadd.f32 0.0, %v512
      %514 = vmatmul.bf16.gmra.mxu0 %v477
      %v515 = vpop.f32.mrf.mxu0
      %v516 = vadd.f32 0.0, %v515
      %v517 = vpop.f32.mrf.mxu0
      %v518 = vadd.f32 0.0, %v517
      %519 = vmatmul.bf16.gmra.mxu0 %v480
      %v520 = vpop.f32.mrf.mxu0
      %v521 = vadd.f32 0.0, %v520
      %v522 = vpop.f32.mrf.mxu0
      %v523 = vadd.f32 0.0, %v522
      %524 = vmatmul.bf16.gmra.mxu0 %v483
      %v525 = vpop.f32.mrf.mxu0
      %v526 = vadd.f32 0.0, %v525
      %v527 = vpop.f32.mrf.mxu0
      %v528 = vadd.f32 0.0, %v527
      %529 = vmatmul.bf16.gmra.mxu0 %v486
      %v530 = vpop.f32.mrf.mxu0
      %v531 = vadd.f32 0.0, %v530
      %v532 = vpop.f32.mrf.mxu0
      %v533 = vadd.f32 0.0, %v532
      %534 = vmatmul.bf16.gmra.mxu0 %v489
      %v535 = vpop.f32.mrf.mxu0
      %v536 = vadd.f32 0.0, %v535
      %v537 = vpop.f32.mrf.mxu0
      %v538 = vadd.f32 0.0, %v537
      %539 = vdwg.mxu0
      %v556 = vunpack.c.l.b16 %v351
      %v557 = vunpack.c.l.b16 %v352
      %v558 = vunpack.c.l.b16 %v353
      %v559 = vunpack.c.l.b16 %v354
      %v560 = vunpack.c.l.b16 %v355
      %v561 = vunpack.c.l.b16 %v356
      %v562 = vunpack.c.l.b16 %v357
      %v563 = vunpack.c.l.b16 %v358
      %v564 = vunpack.c.l.b16 %v359
      %v565 = vunpack.c.l.b16 %v360
      %v566 = vunpack.c.l.b16 %v361
      %v567 = vunpack.c.l.b16 %v362
      %v568 = vunpack.c.l.b16 %v363
      %v569 = vunpack.c.l.b16 %v364
      %v570 = vunpack.c.l.b16 %v365
      %v571 = vunpack.c.l.b16 %v366
      %v572 = vpack.c.b16 %v557, %v556
      %v573 = vpack.c.b16 %v559, %v558
      %v574 = vpack.c.b16 %v561, %v560
      %v575 = vpack.c.b16 %v563, %v562
      %v576 = vpack.c.b16 %v565, %v564
      %v577 = vpack.c.b16 %v567, %v566
      %v578 = vpack.c.b16 %v569, %v568
      %v579 = vpack.c.b16 %v571, %v570
      %v581 = vsel %vm466, %v572, 0
      %v584 = vsel %vm466, %v573, 0
      %v587 = vsel %vm466, %v574, 0
      %v590 = vsel %vm466, %v575, 0
      %v593 = vsel %vm466, %v576, 0
      %v596 = vsel %vm466, %v577, 0
      %v599 = vsel %vm466, %v578, 0
      %v602 = vsel %vm466, %v579, 0
      %604 = vmatpush.bf16.msra.mxu0 0
      %605 = vmatpush.bf16.msra.mxu0 0
      %606 = vmatpush.bf16.msra.mxu0 0
      %607 = vmatpush.bf16.msra.mxu0 0
      %608 = vmatpush.bf16.msra.mxu0 %v350
      %609 = vmatpush.bf16.msra.mxu0 %v349
      %610 = vmatpush.bf16.msra.mxu0 %v348
      %611 = vmatpush.bf16.msra.mxu0 %v347
      %612 = vmatmul.bf16.gmra.mxu0 %v581
      %v613 = vpop.f32.mrf.mxu0
      %v614 = vadd.f32 %v501, %v613
      %v615 = vpop.f32.mrf.mxu0
      %v616 = vadd.f32 %v503, %v615
      %617 = vmatmul.bf16.gmra.mxu0 %v584
      %v618 = vpop.f32.mrf.mxu0
      %v619 = vadd.f32 %v506, %v618
      %v620 = vpop.f32.mrf.mxu0
      %v621 = vadd.f32 %v508, %v620
      %622 = vmatmul.bf16.gmra.mxu0 %v587
      %v623 = vpop.f32.mrf.mxu0
      %v624 = vadd.f32 %v511, %v623
      %v625 = vpop.f32.mrf.mxu0
      %v626 = vadd.f32 %v513, %v625
      %627 = vmatmul.bf16.gmra.mxu0 %v590
      %v628 = vpop.f32.mrf.mxu0
      %v629 = vadd.f32 %v516, %v628
      %v630 = vpop.f32.mrf.mxu0
      %v631 = vadd.f32 %v518, %v630
      %632 = vmatmul.bf16.gmra.mxu0 %v593
      %v633 = vpop.f32.mrf.mxu0
      %v634 = vadd.f32 %v521, %v633
      %v635 = vpop.f32.mrf.mxu0
      %v636 = vadd.f32 %v523, %v635
      %637 = vmatmul.bf16.gmra.mxu0 %v596
      %v638 = vpop.f32.mrf.mxu0
      %v639 = vadd.f32 %v526, %v638
      %v640 = vpop.f32.mrf.mxu0
      %v641 = vadd.f32 %v528, %v640
      %642 = vmatmul.bf16.gmra.mxu0 %v599
      %v643 = vpop.f32.mrf.mxu0
      %v644 = vadd.f32 %v531, %v643
      %v645 = vpop.f32.mrf.mxu0
      %v646 = vadd.f32 %v533, %v645
      %647 = vmatmul.bf16.gmra.mxu0 %v602
      %v648 = vpop.f32.mrf.mxu0
      %v649 = vadd.f32 %v536, %v648
      %v650 = vpop.f32.mrf.mxu0
      %v651 = vadd.f32 %v538, %v650
      %652 = vdwg.mxu0
      %s653 = scalar_lea.vmem %s1, 16
      %v654 = vld [vmem:[%s653] sm:$0xf]
      %v655 = vld [vmem:[%s653 + $0x4] sm:$0xf]
      %v658 = vunpack.c.l.b16 %v654
      %v659 = vunpack.c.l.b16 %v655
      %v660 = vpack.c.b16 %v659, %v658
      %662 = vmatpush.bf16.msra.mxu0 0
      %663 = vmatpush.bf16.msra.mxu0 0
      %664 = vmatpush.bf16.msra.mxu0 0
      %665 = vmatpush.bf16.msra.mxu0 0
      %666 = vmatpush.bf16.msra.mxu0 0
      %667 = vmatpush.bf16.msra.mxu0 0
      %668 = vmatpush.bf16.msra.mxu0 0
      %669 = vmatpush.bf16.msra.mxu0 %v660
      %670 = vmatmul.bf16.gmra.mxu0 %v307
      %v671 = vpop.f32.mrf.mxu0
      %v672 = vadd.f32 0.0, %v671
      %v673 = vpop.f32.mrf.mxu0
      %v674 = vadd.f32 0.0, %v673
      %675 = vmatmul.bf16.gmra.mxu0 %v310
      %v676 = vpop.f32.mrf.mxu0
      %v677 = vadd.f32 0.0, %v676
      %v678 = vpop.f32.mrf.mxu0
      %v679 = vadd.f32 0.0, %v678
      %680 = vmatmul.bf16.gmra.mxu0 %v313
      %v681 = vpop.f32.mrf.mxu0
      %v682 = vadd.f32 0.0, %v681
      %v683 = vpop.f32.mrf.mxu0
      %v684 = vadd.f32 0.0, %v683
      %685 = vmatmul.bf16.gmra.mxu0 %v316
      %v686 = vpop.f32.mrf.mxu0
      %v687 = vadd.f32 0.0, %v686
      %v688 = vpop.f32.mrf.mxu0
      %v689 = vadd.f32 0.0, %v688
      %690 = vdwg.mxu0
      %v691 = vpack.c.bf16 %v674, %v672
      %v692 = vpack.c.bf16 %v679, %v677
      %v693 = vpack.c.bf16 %v684, %v682
      %v694 = vpack.c.bf16 %v689, %v687
      %s695 = scalar_lea.vmem %s2, 128
      %v696 = vld [vmem:[%s695] sm:$0xf]
      %v697 = vld [vmem:[%s695 + $0x4] sm:$0xf]
      %v698 = vld [vmem:[%s695 + $0x8] sm:$0xf]
      %v699 = vld [vmem:[%s695 + $0xc] sm:$0xf]
      %v700 = vld [vmem:[%s695 + $0x10] sm:$0xf]
      %v701 = vld [vmem:[%s695 + $0x14] sm:$0xf]
      %v702 = vld [vmem:[%s695 + $0x18] sm:$0xf]
      %v703 = vld [vmem:[%s695 + $0x1c] sm:$0xf]
      %v704 = vld [vmem:[%s695 + $0x20] sm:$0xf]
      %v705 = vld [vmem:[%s695 + $0x24] sm:$0xf]
      %v706 = vld [vmem:[%s695 + $0x28] sm:$0xf]
      %v707 = vld [vmem:[%s695 + $0x2c] sm:$0xf]
      %v708 = vld [vmem:[%s695 + $0x30] sm:$0xf]
      %v709 = vld [vmem:[%s695 + $0x34] sm:$0xf]
      %v710 = vld [vmem:[%s695 + $0x38] sm:$0xf]
      %v711 = vld [vmem:[%s695 + $0x3c] sm:$0xf]
      %v728 = vunpack.c.l.b16 %v696
      %v729 = vunpack.c.l.b16 %v697
      %v730 = vunpack.c.l.b16 %v698
      %v731 = vunpack.c.l.b16 %v699
      %v732 = vunpack.c.l.b16 %v700
      %v733 = vunpack.c.l.b16 %v701
      %v734 = vunpack.c.l.b16 %v702
      %v735 = vunpack.c.l.b16 %v703
      %v736 = vunpack.c.l.b16 %v704
      %v737 = vunpack.c.l.b16 %v705
      %v738 = vunpack.c.l.b16 %v706
      %v739 = vunpack.c.l.b16 %v707
      %v740 = vunpack.c.l.b16 %v708
      %v741 = vunpack.c.l.b16 %v709
      %v742 = vunpack.c.l.b16 %v710
      %v743 = vunpack.c.l.b16 %v711
      %v744 = vpack.c.b16 %v729, %v728
      %v745 = vpack.c.b16 %v731, %v730
      %v746 = vpack.c.b16 %v733, %v732
      %v747 = vpack.c.b16 %v735, %v734
      %v748 = vpack.c.b16 %v737, %v736
      %v749 = vpack.c.b16 %v739, %v738
      %v750 = vpack.c.b16 %v741, %v740
      %v751 = vpack.c.b16 %v743, %v742
      %v753 = vsel %vm466, %v744, 0
      %v756 = vsel %vm466, %v745, 0
      %v759 = vsel %vm466, %v746, 0
      %v762 = vsel %vm466, %v747, 0
      %v765 = vsel %vm466, %v748, 0
      %v768 = vsel %vm466, %v749, 0
      %v771 = vsel %vm466, %v750, 0
      %v774 = vsel %vm466, %v751, 0
      %776 = vmatpush.bf16.msra.mxu0 0
      %777 = vmatpush.bf16.msra.mxu0 0
      %778 = vmatpush.bf16.msra.mxu0 0
      %779 = vmatpush.bf16.msra.mxu0 0
      %780 = vmatpush.bf16.msra.mxu0 %v694
      %781 = vmatpush.bf16.msra.mxu0 %v693
      %782 = vmatpush.bf16.msra.mxu0 %v692
      %783 = vmatpush.bf16.msra.mxu0 %v691
      %784 = vmatmul.bf16.gmra.mxu0 %v753
      %v785 = vpop.f32.mrf.mxu0
      %v786 = vadd.f32 0.0, %v785
      %v787 = vpop.f32.mrf.mxu0
      %v788 = vadd.f32 0.0, %v787
      %789 = vmatmul.bf16.gmra.mxu0 %v756
      %v790 = vpop.f32.mrf.mxu0
      %v791 = vadd.f32 0.0, %v790
      %v792 = vpop.f32.mrf.mxu0
      %v793 = vadd.f32 0.0, %v792
      %794 = vmatmul.bf16.gmra.mxu0 %v759
      %v795 = vpop.f32.mrf.mxu0
      %v796 = vadd.f32 0.0, %v795
      %v797 = vpop.f32.mrf.mxu0
      %v798 = vadd.f32 0.0, %v797
      %799 = vmatmul.bf16.gmra.mxu0 %v762
      %v800 = vpop.f32.mrf.mxu0
      %v801 = vadd.f32 0.0, %v800
      %v802 = vpop.f32.mrf.mxu0
      %v803 = vadd.f32 0.0, %v802
      %804 = vmatmul.bf16.gmra.mxu0 %v765
      %v805 = vpop.f32.mrf.mxu0
      %v806 = vadd.f32 0.0, %v805
      %v807 = vpop.f32.mrf.mxu0
      %v808 = vadd.f32 0.0, %v807
      %809 = vmatmul.bf16.gmra.mxu0 %v768
      %v810 = vpop.f32.mrf.mxu0
      %v811 = vadd.f32 0.0, %v810
      %v812 = vpop.f32.mrf.mxu0
      %v813 = vadd.f32 0.0, %v812
      %814 = vmatmul.bf16.gmra.mxu0 %v771
      %v815 = vpop.f32.mrf.mxu0
      %v816 = vadd.f32 0.0, %v815
      %v817 = vpop.f32.mrf.mxu0
      %v818 = vadd.f32 0.0, %v817
      %819 = vmatmul.bf16.gmra.mxu0 %v774
      %v820 = vpop.f32.mrf.mxu0
      %v821 = vadd.f32 0.0, %v820
      %v822 = vpop.f32.mrf.mxu0
      %v823 = vadd.f32 0.0, %v822
      %824 = vdwg.mxu0
      %v825 = vadd.f32 %v614, %v786
      %v826 = vadd.f32 %v616, %v788
      %v827 = vadd.f32 %v619, %v791
      %v828 = vadd.f32 %v621, %v793
      %v829 = vadd.f32 %v624, %v796
      %v830 = vadd.f32 %v626, %v798
      %v831 = vadd.f32 %v629, %v801
      %v832 = vadd.f32 %v631, %v803
      %v833 = vadd.f32 %v634, %v806
      %v834 = vadd.f32 %v636, %v808
      %v835 = vadd.f32 %v639, %v811
      %v836 = vadd.f32 %v641, %v813
      %v837 = vadd.f32 %v644, %v816
      %v838 = vadd.f32 %v646, %v818
      %v839 = vadd.f32 %v649, %v821
      %v840 = vadd.f32 %v651, %v823
      %842 = vset.pattern.permute.xlu0 0
      %843 = vperm.xlu0 %842, %v261
      %v844 = vpop.permute.xlu0 %843
      %847 = vset.pattern.permute.xlu0 0
      %848 = vperm.xlu0 %847, %v262
      %v849 = vpop.permute.xlu0 %848
      %852 = vset.pattern.permute.xlu0 0
      %853 = vperm.xlu0 %852, %v263
      %v854 = vpop.permute.xlu0 %853
      %857 = vset.pattern.permute.xlu0 0
      %858 = vperm.xlu0 %857, %v264
      %v859 = vpop.permute.xlu0 %858
      %862 = vset.pattern.permute.xlu0 0
      %863 = vperm.xlu0 %862, %v265
      %v864 = vpop.permute.xlu0 %863
      %867 = vset.pattern.permute.xlu0 0
      %868 = vperm.xlu0 %867, %v266
      %v869 = vpop.permute.xlu0 %868
      %872 = vset.pattern.permute.xlu0 0
      %873 = vperm.xlu0 %872, %v267
      %v874 = vpop.permute.xlu0 %873
      %877 = vset.pattern.permute.xlu0 0
      %878 = vperm.xlu0 %877, %v268
      %v879 = vpop.permute.xlu0 %878
      %882 = vset.pattern.permute.xlu0 0
      %883 = vperm.xlu0 %882, %v269
      %v884 = vpop.permute.xlu0 %883
      %887 = vset.pattern.permute.xlu0 0
      %888 = vperm.xlu0 %887, %v270
      %v889 = vpop.permute.xlu0 %888
      %892 = vset.pattern.permute.xlu0 0
      %893 = vperm.xlu0 %892, %v271
      %v894 = vpop.permute.xlu0 %893
      %897 = vset.pattern.permute.xlu0 0
      %898 = vperm.xlu0 %897, %v272
      %v899 = vpop.permute.xlu0 %898
      %902 = vset.pattern.permute.xlu0 0
      %903 = vperm.xlu0 %902, %v273
      %v904 = vpop.permute.xlu0 %903
      %907 = vset.pattern.permute.xlu0 0
      %908 = vperm.xlu0 %907, %v274
      %v909 = vpop.permute.xlu0 %908
      %912 = vset.pattern.permute.xlu0 0
      %913 = vperm.xlu0 %912, %v275
      %v914 = vpop.permute.xlu0 %913
      %917 = vset.pattern.permute.xlu0 0
      %918 = vperm.xlu0 %917, %v276
      %v919 = vpop.permute.xlu0 %918
      %v921 = vadd.f32 %v825, %v844
      %v922 = vadd.f32 %v826, %v849
      %v923 = vadd.f32 %v827, %v854
      %v924 = vadd.f32 %v828, %v859
      %v925 = vadd.f32 %v829, %v864
      %v926 = vadd.f32 %v830, %v869
      %v927 = vadd.f32 %v831, %v874
      %v928 = vadd.f32 %v832, %v879
      %v929 = vadd.f32 %v833, %v884
      %v930 = vadd.f32 %v834, %v889
      %v931 = vadd.f32 %v835, %v894
      %v932 = vadd.f32 %v836, %v899
      %v933 = vadd.f32 %v837, %v904
      %v934 = vadd.f32 %v838, %v909
      %v935 = vadd.f32 %v839, %v914
      %v936 = vadd.f32 %v840, %v919
      %v937 = vmax.f32 %v921, 0.0
      %v938 = vmax.f32 %v922, 0.0
      %v939 = vmax.f32 %v923, 0.0
      %v940 = vmax.f32 %v924, 0.0
      %v941 = vmax.f32 %v925, 0.0
      %v942 = vmax.f32 %v926, 0.0
      %v943 = vmax.f32 %v927, 0.0
      %v944 = vmax.f32 %v928, 0.0
      %v945 = vmax.f32 %v929, 0.0
      %v946 = vmax.f32 %v930, 0.0
      %v947 = vmax.f32 %v931, 0.0
      %v948 = vmax.f32 %v932, 0.0
      %v949 = vmax.f32 %v933, 0.0
      %v950 = vmax.f32 %v934, 0.0
      %v951 = vmax.f32 %v935, 0.0
      %v952 = vmax.f32 %v936, 0.0
      %v953 = vpack.c.bf16 %v938, %v937
      %v954 = vpack.c.bf16 %v940, %v939
      %v955 = vpack.c.bf16 %v942, %v941
      %v956 = vpack.c.bf16 %v944, %v943
      %v957 = vpack.c.bf16 %v946, %v945
      %v958 = vpack.c.bf16 %v948, %v947
      %v959 = vpack.c.bf16 %v950, %v949
      %v960 = vpack.c.bf16 %v952, %v951
      %v961 = vld [vmem:[%s3] sm:$0xf]
      %v962 = vld [vmem:[%s3 + $0x4] sm:$0xf]
      %v963 = vld [vmem:[%s3 + $0x8] sm:$0xf]
      %v964 = vld [vmem:[%s3 + $0xc] sm:$0xf]
      %v965 = vld [vmem:[%s3 + $0x10] sm:$0xf]
      %v966 = vld [vmem:[%s3 + $0x14] sm:$0xf]
      %v967 = vld [vmem:[%s3 + $0x18] sm:$0xf]
      %v968 = vld [vmem:[%s3 + $0x1c] sm:$0xf]
      %v969 = vld [vmem:[%s3 + $0x20] sm:$0xf]
      %v970 = vld [vmem:[%s3 + $0x24] sm:$0xf]
      %v971 = vld [vmem:[%s3 + $0x28] sm:$0xf]
      %v972 = vld [vmem:[%s3 + $0x2c] sm:$0xf]
      %v973 = vld [vmem:[%s3 + $0x30] sm:$0xf]
      %v974 = vld [vmem:[%s3 + $0x34] sm:$0xf]
      %v975 = vld [vmem:[%s3 + $0x38] sm:$0xf]
      %v976 = vld [vmem:[%s3 + $0x3c] sm:$0xf]
      %977 = vset.pattern.permute.xlu0 1
      %978 = vperm.xlu0 %977, %v261
      %v979 = vpop.permute.xlu0 %978
      %981 = vset.pattern.permute.xlu0 1
      %982 = vperm.xlu0 %981, %v262
      %v983 = vpop.permute.xlu0 %982
      %985 = vset.pattern.permute.xlu0 1
      %986 = vperm.xlu0 %985, %v263
      %v987 = vpop.permute.xlu0 %986
      %989 = vset.pattern.permute.xlu0 1
      %990 = vperm.xlu0 %989, %v264
      %v991 = vpop.permute.xlu0 %990
      %993 = vset.pattern.permute.xlu0 1
      %994 = vperm.xlu0 %993, %v265
      %v995 = vpop.permute.xlu0 %994
      %997 = vset.pattern.permute.xlu0 1
      %998 = vperm.xlu0 %997, %v266
      %v999 = vpop.permute.xlu0 %998
      %1001 = vset.pattern.permute.xlu0 1
      %1002 = vperm.xlu0 %1001, %v267
      %v1003 = vpop.permute.xlu0 %1002
      %1005 = vset.pattern.permute.xlu0 1
      %1006 = vperm.xlu0 %1005, %v268
      %v1007 = vpop.permute.xlu0 %1006
      %1009 = vset.pattern.permute.xlu0 1
      %1010 = vperm.xlu0 %1009, %v269
      %v1011 = vpop.permute.xlu0 %1010
      %1013 = vset.pattern.permute.xlu0 1
      %1014 = vperm.xlu0 %1013, %v270
      %v1015 = vpop.permute.xlu0 %1014
      %1017 = vset.pattern.permute.xlu0 1
      %1018 = vperm.xlu0 %1017, %v271
      %v1019 = vpop.permute.xlu0 %1018
      %1021 = vset.pattern.permute.xlu0 1
      %1022 = vperm.xlu0 %1021, %v272
      %v1023 = vpop.permute.xlu0 %1022
      %1025 = vset.pattern.permute.xlu0 1
      %1026 = vperm.xlu0 %1025, %v273
      %v1027 = vpop.permute.xlu0 %1026
      %1029 = vset.pattern.permute.xlu0 1
      %1030 = vperm.xlu0 %1029, %v274
      %v1031 = vpop.permute.xlu0 %1030
      %1033 = vset.pattern.permute.xlu0 1
      %1034 = vperm.xlu0 %1033, %v275
      %v1035 = vpop.permute.xlu0 %1034
      %1037 = vset.pattern.permute.xlu0 1
      %1038 = vperm.xlu0 %1037, %v276
      %v1039 = vpop.permute.xlu0 %1038
      %v1057 = vunpack.c.l.b16 %v961
      %v1058 = vunpack.c.l.b16 %v962
      %v1059 = vunpack.c.l.b16 %v963
      %v1060 = vunpack.c.l.b16 %v964
      %v1061 = vunpack.c.l.b16 %v965
      %v1062 = vunpack.c.l.b16 %v966
      %v1063 = vunpack.c.l.b16 %v967
      %v1064 = vunpack.c.l.b16 %v968
      %v1065 = vunpack.c.l.b16 %v969
      %v1066 = vunpack.c.l.b16 %v970
      %v1067 = vunpack.c.l.b16 %v971
      %v1068 = vunpack.c.l.b16 %v972
      %v1069 = vunpack.c.l.b16 %v973
      %v1070 = vunpack.c.l.b16 %v974
      %v1071 = vunpack.c.l.b16 %v975
      %v1072 = vunpack.c.l.b16 %v976
      %v1073 = vpack.c.b16 %v1058, %v1057
      %v1074 = vpack.c.b16 %v1060, %v1059
      %v1075 = vpack.c.b16 %v1062, %v1061
      %v1076 = vpack.c.b16 %v1064, %v1063
      %v1077 = vpack.c.b16 %v1066, %v1065
      %v1078 = vpack.c.b16 %v1068, %v1067
      %v1079 = vpack.c.b16 %v1070, %v1069
      %v1080 = vpack.c.b16 %v1072, %v1071
      %1089 = vmatpush.bf16.msra.mxu0 %v960
      %1090 = vmatpush.bf16.msra.mxu0 %v959
      %1091 = vmatpush.bf16.msra.mxu0 %v958
      %1092 = vmatpush.bf16.msra.mxu0 %v957
      %1093 = vmatpush.bf16.msra.mxu0 %v956
      %1094 = vmatpush.bf16.msra.mxu0 %v955
      %1095 = vmatpush.bf16.msra.mxu0 %v954
      %1096 = vmatpush.bf16.msra.mxu0 %v953
      %1097 = vmatmul.bf16.gmra.mxu0 %v1073
      %v1098 = vpop.f32.mrf.mxu0
      %v1099 = vadd.f32 %v979, %v1098
      %v1100 = vpop.f32.mrf.mxu0
      %v1101 = vadd.f32 %v983, %v1100
      %1102 = vmatmul.bf16.gmra.mxu0 %v1074
      %v1103 = vpop.f32.mrf.mxu0
      %v1104 = vadd.f32 %v987, %v1103
      %v1105 = vpop.f32.mrf.mxu0
      %v1106 = vadd.f32 %v991, %v1105
      %1107 = vmatmul.bf16.gmra.mxu0 %v1075
      %v1108 = vpop.f32.mrf.mxu0
      %v1109 = vadd.f32 %v995, %v1108
      %v1110 = vpop.f32.mrf.mxu0
      %v1111 = vadd.f32 %v999, %v1110
      %1112 = vmatmul.bf16.gmra.mxu0 %v1076
      %v1113 = vpop.f32.mrf.mxu0
      %v1114 = vadd.f32 %v1003, %v1113
      %v1115 = vpop.f32.mrf.mxu0
      %v1116 = vadd.f32 %v1007, %v1115
      %1117 = vmatmul.bf16.gmra.mxu0 %v1077
      %v1118 = vpop.f32.mrf.mxu0
      %v1119 = vadd.f32 %v1011, %v1118
      %v1120 = vpop.f32.mrf.mxu0
      %v1121 = vadd.f32 %v1015, %v1120
      %1122 = vmatmul.bf16.gmra.mxu0 %v1078
      %v1123 = vpop.f32.mrf.mxu0
      %v1124 = vadd.f32 %v1019, %v1123
      %v1125 = vpop.f32.mrf.mxu0
      %v1126 = vadd.f32 %v1023, %v1125
      %1127 = vmatmul.bf16.gmra.mxu0 %v1079
      %v1128 = vpop.f32.mrf.mxu0
      %v1129 = vadd.f32 %v1027, %v1128
      %v1130 = vpop.f32.mrf.mxu0
      %v1131 = vadd.f32 %v1031, %v1130
      %1132 = vmatmul.bf16.gmra.mxu0 %v1080
      %v1133 = vpop.f32.mrf.mxu0
      %v1134 = vadd.f32 %v1035, %v1133
      %v1135 = vpop.f32.mrf.mxu0
      %v1136 = vadd.f32 %v1039, %v1135
      %1137 = vdwg.mxu0
      %v1138 = vmax.f32 %v1099, 0.0
      %v1139 = vmax.f32 %v1101, 0.0
      %v1140 = vmax.f32 %v1104, 0.0
      %v1141 = vmax.f32 %v1106, 0.0
      %v1142 = vmax.f32 %v1109, 0.0
      %v1143 = vmax.f32 %v1111, 0.0
      %v1144 = vmax.f32 %v1114, 0.0
      %v1145 = vmax.f32 %v1116, 0.0
      %v1146 = vmax.f32 %v1119, 0.0
      %v1147 = vmax.f32 %v1121, 0.0
      %v1148 = vmax.f32 %v1124, 0.0
      %v1149 = vmax.f32 %v1126, 0.0
      %v1150 = vmax.f32 %v1129, 0.0
      %v1151 = vmax.f32 %v1131, 0.0
      %v1152 = vmax.f32 %v1134, 0.0
      %v1153 = vmax.f32 %v1136, 0.0
      %v1154 = vld [vmem:[%s4] sm:$0xf]
      %v1155 = vld [vmem:[%s4 + $0x4] sm:$0xf]
      %v1156 = vld [vmem:[%s4 + $0x8] sm:$0xf]
      %v1157 = vld [vmem:[%s4 + $0xc] sm:$0xf]
      %v1158 = vld [vmem:[%s4 + $0x10] sm:$0xf]
      %v1159 = vld [vmem:[%s4 + $0x14] sm:$0xf]
      %v1160 = vld [vmem:[%s4 + $0x18] sm:$0xf]
      %v1161 = vld [vmem:[%s4 + $0x1c] sm:$0xf]
      %v1162 = vld [vmem:[%s4 + $0x20] sm:$0xf]
      %v1163 = vld [vmem:[%s4 + $0x24] sm:$0xf]
      %v1164 = vld [vmem:[%s4 + $0x28] sm:$0xf]
      %v1165 = vld [vmem:[%s4 + $0x2c] sm:$0xf]
      %v1166 = vld [vmem:[%s4 + $0x30] sm:$0xf]
      %v1167 = vld [vmem:[%s4 + $0x34] sm:$0xf]
      %v1168 = vld [vmem:[%s4 + $0x38] sm:$0xf]
      %v1169 = vld [vmem:[%s4 + $0x3c] sm:$0xf]
      %1170 = vset.pattern.permute.xlu0 2
      %1171 = vperm.xlu0 %1170, %v261
      %v1172 = vpop.permute.xlu0 %1171
      %1174 = vset.pattern.permute.xlu0 2
      %1175 = vperm.xlu0 %1174, %v262
      %v1176 = vpop.permute.xlu0 %1175
      %1178 = vset.pattern.permute.xlu0 2
      %1179 = vperm.xlu0 %1178, %v263
      %v1180 = vpop.permute.xlu0 %1179
      %1182 = vset.pattern.permute.xlu0 2
      %1183 = vperm.xlu0 %1182, %v264
      %v1184 = vpop.permute.xlu0 %1183
      %1186 = vset.pattern.permute.xlu0 2
      %1187 = vperm.xlu0 %1186, %v265
      %v1188 = vpop.permute.xlu0 %1187
      %1190 = vset.pattern.permute.xlu0 2
      %1191 = vperm.xlu0 %1190, %v266
      %v1192 = vpop.permute.xlu0 %1191
      %1194 = vset.pattern.permute.xlu0 2
      %1195 = vperm.xlu0 %1194, %v267
      %v1196 = vpop.permute.xlu0 %1195
      %1198 = vset.pattern.permute.xlu0 2
      %1199 = vperm.xlu0 %1198, %v268
      %v1200 = vpop.permute.xlu0 %1199
      %1202 = vset.pattern.permute.xlu0 2
      %1203 = vperm.xlu0 %1202, %v269
      %v1204 = vpop.permute.xlu0 %1203
      %1206 = vset.pattern.permute.xlu0 2
      %1207 = vperm.xlu0 %1206, %v270
      %v1208 = vpop.permute.xlu0 %1207
      %1210 = vset.pattern.permute.xlu0 2
      %1211 = vperm.xlu0 %1210, %v271
      %v1212 = vpop.permute.xlu0 %1211
      %1214 = vset.pattern.permute.xlu0 2
      %1215 = vperm.xlu0 %1214, %v272
      %v1216 = vpop.permute.xlu0 %1215
      %1218 = vset.pattern.permute.xlu0 2
      %1219 = vperm.xlu0 %1218, %v273
      %v1220 = vpop.permute.xlu0 %1219
      %1222 = vset.pattern.permute.xlu0 2
      %1223 = vperm.xlu0 %1222, %v274
      %v1224 = vpop.permute.xlu0 %1223
      %1226 = vset.pattern.permute.xlu0 2
      %1227 = vperm.xlu0 %1226, %v275
      %v1228 = vpop.permute.xlu0 %1227
      %1230 = vset.pattern.permute.xlu0 2
      %1231 = vperm.xlu0 %1230, %v276
      %v1232 = vpop.permute.xlu0 %1231
      %v1250 = vunpack.c.l.b16 %v1154
      %v1251 = vunpack.c.l.b16 %v1155
      %v1252 = vunpack.c.l.b16 %v1156
      %v1253 = vunpack.c.l.b16 %v1157
      %v1254 = vunpack.c.l.b16 %v1158
      %v1255 = vunpack.c.l.b16 %v1159
      %v1256 = vunpack.c.l.b16 %v1160
      %v1257 = vunpack.c.l.b16 %v1161
      %v1258 = vunpack.c.l.b16 %v1162
      %v1259 = vunpack.c.l.b16 %v1163
      %v1260 = vunpack.c.l.b16 %v1164
      %v1261 = vunpack.c.l.b16 %v1165
      %v1262 = vunpack.c.l.b16 %v1166
      %v1263 = vunpack.c.l.b16 %v1167
      %v1264 = vunpack.c.l.b16 %v1168
      %v1265 = vunpack.c.l.b16 %v1169
      %v1266 = vpack.c.b16 %v1251, %v1250
      %v1267 = vpack.c.b16 %v1253, %v1252
      %v1268 = vpack.c.b16 %v1255, %v1254
      %v1269 = vpack.c.b16 %v1257, %v1256
      %v1270 = vpack.c.b16 %v1259, %v1258
      %v1271 = vpack.c.b16 %v1261, %v1260
      %v1272 = vpack.c.b16 %v1263, %v1262
      %v1273 = vpack.c.b16 %v1265, %v1264
      %v1279 = vsel %vm466, %v1266, 0
      %v1282 = vsel %vm466, %v1267, 0
      %v1285 = vsel %vm466, %v1268, 0
      %v1288 = vsel %vm466, %v1269, 0
      %v1291 = vsel %vm466, %v1270, 0
      %v1294 = vsel %vm466, %v1271, 0
      %v1297 = vsel %vm466, %v1272, 0
      %v1300 = vsel %vm466, %v1273, 0
      %1302 = vmatpush.bf16.msra.mxu0 0
      %1303 = vmatpush.bf16.msra.mxu0 0
      %1304 = vmatpush.bf16.msra.mxu0 0
      %1305 = vmatpush.bf16.msra.mxu0 0
      %1306 = vmatpush.bf16.msra.mxu0 %v298
      %1307 = vmatpush.bf16.msra.mxu0 %v297
      %1308 = vmatpush.bf16.msra.mxu0 %v296
      %1309 = vmatpush.bf16.msra.mxu0 %v295
      %1310 = vmatmul.bf16.gmra.mxu0 %v1279
      %v1311 = vpop.f32.mrf.mxu0
      %v1312 = vadd.f32 %v1172, %v1311
      %v1313 = vpop.f32.mrf.mxu0
      %v1314 = vadd.f32 %v1176, %v1313
      %1315 = vmatmul.bf16.gmra.mxu0 %v1282
      %v1316 = vpop.f32.mrf.mxu0
      %v1317 = vadd.f32 %v1180, %v1316
      %v1318 = vpop.f32.mrf.mxu0
      %v1319 = vadd.f32 %v1184, %v1318
      %1320 = vmatmul.bf16.gmra.mxu0 %v1285
      %v1321 = vpop.f32.mrf.mxu0
      %v1322 = vadd.f32 %v1188, %v1321
      %v1323 = vpop.f32.mrf.mxu0
      %v1324 = vadd.f32 %v1192, %v1323
      %1325 = vmatmul.bf16.gmra.mxu0 %v1288
      %v1326 = vpop.f32.mrf.mxu0
      %v1327 = vadd.f32 %v1196, %v1326
      %v1328 = vpop.f32.mrf.mxu0
      %v1329 = vadd.f32 %v1200, %v1328
      %1330 = vmatmul.bf16.gmra.mxu0 %v1291
      %v1331 = vpop.f32.mrf.mxu0
      %v1332 = vadd.f32 %v1204, %v1331
      %v1333 = vpop.f32.mrf.mxu0
      %v1334 = vadd.f32 %v1208, %v1333
      %1335 = vmatmul.bf16.gmra.mxu0 %v1294
      %v1336 = vpop.f32.mrf.mxu0
      %v1337 = vadd.f32 %v1212, %v1336
      %v1338 = vpop.f32.mrf.mxu0
      %v1339 = vadd.f32 %v1216, %v1338
      %1340 = vmatmul.bf16.gmra.mxu0 %v1297
      %v1341 = vpop.f32.mrf.mxu0
      %v1342 = vadd.f32 %v1220, %v1341
      %v1343 = vpop.f32.mrf.mxu0
      %v1344 = vadd.f32 %v1224, %v1343
      %1345 = vmatmul.bf16.gmra.mxu0 %v1300
      %v1346 = vpop.f32.mrf.mxu0
      %v1347 = vadd.f32 %v1228, %v1346
      %v1348 = vpop.f32.mrf.mxu0
      %v1349 = vadd.f32 %v1232, %v1348
      %1350 = vdwg.mxu0
      %v1351 = vmax.f32 %v1312, 0.0
      %v1352 = vmax.f32 %v1314, 0.0
      %v1353 = vmax.f32 %v1317, 0.0
      %v1354 = vmax.f32 %v1319, 0.0
      %v1355 = vmax.f32 %v1322, 0.0
      %v1356 = vmax.f32 %v1324, 0.0
      %v1357 = vmax.f32 %v1327, 0.0
      %v1358 = vmax.f32 %v1329, 0.0
      %v1359 = vmax.f32 %v1332, 0.0
      %v1360 = vmax.f32 %v1334, 0.0
      %v1361 = vmax.f32 %v1337, 0.0
      %v1362 = vmax.f32 %v1339, 0.0
      %v1363 = vmax.f32 %v1342, 0.0
      %v1364 = vmax.f32 %v1344, 0.0
      %v1365 = vmax.f32 %v1347, 0.0
      %v1366 = vmax.f32 %v1349, 0.0
      %v1367 = vadd.f32 %v1138, %v1351
      %v1368 = vadd.f32 %v1139, %v1352
      %v1369 = vadd.f32 %v1140, %v1353
      %v1370 = vadd.f32 %v1141, %v1354
      %v1371 = vadd.f32 %v1142, %v1355
      %v1372 = vadd.f32 %v1143, %v1356
      %v1373 = vadd.f32 %v1144, %v1357
      %v1374 = vadd.f32 %v1145, %v1358
      %v1375 = vadd.f32 %v1146, %v1359
      %v1376 = vadd.f32 %v1147, %v1360
      %v1377 = vadd.f32 %v1148, %v1361
      %v1378 = vadd.f32 %v1149, %v1362
      %v1379 = vadd.f32 %v1150, %v1363
      %v1380 = vadd.f32 %v1151, %v1364
      %v1381 = vadd.f32 %v1152, %v1365
      %v1382 = vadd.f32 %v1153, %v1366
      %1383 = vst.msk [vmem:[%s251] sm:$0xff] %vm305, %v1367
      %1384 = vst.msk [vmem:[%s251 + $0x8] sm:$0xff] %vm305, %v1368
      %1385 = vst.msk [vmem:[%s251 + $0x10] sm:$0xff] %vm305, %v1369
      %1386 = vst.msk [vmem:[%s251 + $0x18] sm:$0xff] %vm305, %v1370
      %1387 = vst.msk [vmem:[%s251 + $0x20] sm:$0xff] %vm305, %v1371
      %1388 = vst.msk [vmem:[%s251 + $0x28] sm:$0xff] %vm305, %v1372
      %1389 = vst.msk [vmem:[%s251 + $0x30] sm:$0xff] %vm305, %v1373
      %1390 = vst.msk [vmem:[%s251 + $0x38] sm:$0xff] %vm305, %v1374
      %1391 = vst.msk [vmem:[%s251 + $0x40] sm:$0xff] %vm305, %v1375
      %1392 = vst.msk [vmem:[%s251 + $0x48] sm:$0xff] %vm305, %v1376
      %1393 = vst.msk [vmem:[%s251 + $0x50] sm:$0xff] %vm305, %v1377
      %1394 = vst.msk [vmem:[%s251 + $0x58] sm:$0xff] %vm305, %v1378
      %1395 = vst.msk [vmem:[%s251 + $0x60] sm:$0xff] %vm305, %v1379
      %1396 = vst.msk [vmem:[%s251 + $0x68] sm:$0xff] %vm305, %v1380
      %1397 = vst.msk [vmem:[%s251 + $0x70] sm:$0xff] %vm305, %v1381
      %1398 = vst.msk [vmem:[%s251 + $0x78] sm:$0xff] %vm305, %v1382
      %p1399 = scmp.lt.s32.totalorder %s17, 1
      %s1400 = scalar_select %p1399, %s17, 1
      %s1401 = smul.addr %s1400, 16
      %s1402 = smul.addr %s1401, 8
      %s1403 = scalar_lea.vmem %s6, %s1402
      // Predicated region
      $region45: #{tpu_custom_call.1} parent=43 // pred_check
        %p1404 = pneg %p166
      $region46: #{tpu_custom_call.1} parent=43 // pred_check_branch
        %1406 = sbr.rel (%p1404) target = $region48
      $region47: #{tpu_custom_call.1} parent=43 // pred_region
        _
      $region48: #{tpu_custom_call.1} parent=43 // pred_fallthru
        _
    $region44: #{tpu_custom_call.1} parent=5 // pred_fallthru
      _
    %p1407 = scmp.le.s32.totalorder 2, %s12
    // Predicated region
    $region49: #{tpu_custom_call.1} parent=5 // pred_check
      %p1408 = pneg %p1407
    $region50: #{tpu_custom_call.1} parent=5 // pred_check_branch
      %1410 = sbr.rel (%p1408) target = $region52
    $region51: #{tpu_custom_call.1} parent=5 // pred_region
      %s1411 = ssub.s32 %s12, 2
      // Predicated region
      $region53: #{tpu_custom_call.1} parent=51 // pred_check
        %p1412 = pneg %p172
      $region54: #{tpu_custom_call.1} parent=51 // pred_check_branch
        %1414 = sbr.rel (%p1412) target = $region56
      $region55: #{tpu_custom_call.1} parent=51 // pred_region
        %p1415 = scmp.lt.s32.totalorder %s18, 1
        %s1416 = scalar_select %p1415, %s18, 1
        %s1417 = smul.addr %s1416, 16
        %s1418 = smul.addr %s1417, 8
        %s1419 = scalar_lea.vmem %s6, %s1418
      $region56: #{tpu_custom_call.1} parent=51 // pred_fallthru
        _
    $region52: #{tpu_custom_call.1} parent=5 // pred_fallthru
      _
  $region6: #{tpu_custom_call.1} parent=0 // loop_footer
    %s16 = sadd.s32 1, %s12
  $region7: #{tpu_custom_call.1} parent=0 // loop_footer_branch
    %11 = sbr.rel target = $region3
  $region8: #{tpu_custom_call.1} parent=0 // loop_exit
    _

</llo_original>
